<compile_context>
chip_gen: v7x
topology: tpu7x:2x2x1
jax: 0.10.0
libtpu: 0.0.40
codegen_flags: <defaults>
</compile_context>

<pallas_src>
import jax
import jax.numpy as jnp
from jax.experimental import pallas as pl
from jax.experimental.pallas import tpu as pltpu


_LANES = 128
_FMA_K_MAX = 64          # head contraction: VPU FMA path up to this K
_UNROLL_CHUNK_MAX = 64   # python-unroll the per-step chunk loop up to this many chunks


# ----------------------------- tiling helper -------------------------------- #

def _pool_tiling(B, TC, N, itemsize, budget_bytes=6 << 20):
    """Pick (tile_b, tile_n) for the fused pool+head kernel.

    * tile_n: largest multiple of 128 dividing N such that one (1, TC, tile_n)
      slab fits the byte budget (unmasked lane chunks in the kernel).
      Fallback: the full pixel row (always a legal block).
      TODO(synk): a huge N with no multiple-of-128 divisor would need a
      masked-tail grid to stay inside the VMEM budget; not implemented.
    * tile_b: largest divisor of B with tile_b*TC*tile_n*itemsize <= budget,
      capped at B//2 (B >= 2) so the "parallel" batch axis has >= 2 iterations
      (keeps both v7x TensorCores busy on the HBM-bound pool).
    """
    lane_budget = max(_LANES, (budget_bytes // (max(TC, 1) * itemsize)) // _LANES * _LANES)
    lane_cap = min(N, lane_budget)
    tile_n = None
    t = _LANES
    while t <= lane_cap:
        if N % t == 0:
            tile_n = t
        t += _LANES
    if tile_n is None:
        tile_n = N                      # full row: always legal

    b_cap = max(1, B // 2) if B >= 2 else 1
    row_bytes = TC * tile_n * itemsize
    tile_b = 1
    for cand in range(1, b_cap + 1):
        if B % cand == 0 and cand * row_bytes <= budget_bytes:
            tile_b = cand
    return tile_b, tile_n


# ----------------------------- fused kernel --------------------------------- #

def _fused_video_kernel(v_ref, wf_ref, bf_ref, wp_ref, bp_ref, o_ref, acc_ref):
    """Fused pixel sum-pool (across the k grid axis) + tiny head epilogue.

    v_ref : (tile_b, T*C, tile_n)   video tile (any float dtype)
    wf_ref: (T*C, F)  folded feature-head weights (Normalize + 1/(T*H*W) +
                      over-T reduction already baked in)
    bf_ref: (1, F)    folded feature-head bias
    wp_ref: (F, E), bp_ref: (1, E)  projection_layer
    o_ref : (tile_b, 1, E)          L2-normalized embeddings
    acc_ref: (tile_b, T*C, 128) f32 running per-row pixel sums (VMEM scratch)
    """
    k = pl.program_id(1)

    @pl.when(k == 0)
    def _():
        acc_ref[...] = jnp.zeros_like(acc_ref)

    # ---- per-step: VPU-only accumulation of 128-lane chunks ---------------
    tile_n = v_ref.shape[-1]
    n_full, rem = divmod(tile_n, _LANES)
    acc = acc_ref[...]
    if n_full > 0:
        if n_full <= _UNROLL_CHUNK_MAX:
            for c in range(n_full):
                acc = acc + v_ref[:, :, c * _LANES:(c + 1) * _LANES].astype(jnp.float32)
        else:
            def chunk_body(c, a):
                off = pl.multiple_of(c * _LANES, _LANES)
                return a + v_ref[:, :, pl.ds(off, _LANES)].astype(jnp.float32)
            acc = jax.lax.fori_loop(0, n_full, chunk_body, acc, unroll=8)
    if rem:
        # Fallback (tile_n == full row, not a multiple of 128): masked lane add.
        acc = acc.at[:, :, :rem].add(v_ref[:, :, n_full * _LANES:].astype(jnp.float32))
    acc_ref[...] = acc

    # ---- epilogue: once per row tile, on the last reduction step ----------
    @pl.when(k == pl.num_programs(1) - 1)
    def _():
        tb = acc_ref.shape[0]
        K, F = wf_ref.shape
        pooled = jnp.sum(acc_ref[...], axis=-1)          # (tb, T*C): one XLU reduce
        wf = wf_ref[...]
        if K <= _FMA_K_MAX:
            # Tiny contraction: K VPU broadcast-FMAs beat a padded MXU matmul.
            feats = jnp.broadcast_to(bf_ref[...], (tb, F))
            for j in range(K):
                feats = feats + pooled[:, j:j + 1] * wf[j:j + 1, :]
        else:
            feats = jnp.dot(pooled, wf, preferred_element_type=jnp.float32) + bf_ref[...]
        feats = jnp.maximum(feats, 0.0)                  # ReLU

        proj = jnp.dot(feats, wp_ref[...], preferred_element_type=jnp.float32)
        proj = proj + bp_ref[...]

        # torch F.normalize: x / max(||x||_2, 1e-12); rsqrt runs on the EUP slot.
        sq = jnp.sum(proj * proj, axis=-1, keepdims=True)
        out = proj * jax.lax.rsqrt(jnp.maximum(sq, 1e-24))
        o_ref[...] = out[:, None, :].astype(o_ref.dtype)


# ----------------------------- params & folding ------------------------------ #

def init_params(key, channels=3, feature_dim=256, embedding_dim=128):
    """Deterministic (Xavier-uniform-style) parameter init."""
    k1, k2 = jax.random.split(key)

    def xavier(k, fan_in, fan_out):
        lim = jnp.sqrt(6.0 / (fan_in + fan_out))
        return jax.random.uniform(k, (fan_in, fan_out), jnp.float32, -lim, lim)

    return {
        "mean": jnp.full((channels,), 0.45, jnp.float32),
        "std": jnp.full((channels,), 0.225, jnp.float32),
        "w_feat": xavier(k1, channels, feature_dim),
        "b_feat": jnp.zeros((1, feature_dim), jnp.float32),
        "w_proj": xavier(k2, feature_dim, embedding_dim),
        "b_proj": jnp.zeros((1, embedding_dim), jnp.float32),
    }


def fold_head_params(params, num_frames, frame_hw):
    """Fold Normalize(mean,std), the 1/(T*H*W) pooling scale and the over-T
    reduction into the tiny feature-head weights ONCE (outside the per-call
    trace). mean((x-m)/s) == (mean(x)-m)/s and ReLU is applied after the
    affine, so the fold is exact:
        raw_pixel_sums_btc @ w_eff + b_eff == pooled_normalized_bc @ w_feat + b_feat
    Row order: (b, t*C + c) matches jnp.tile(w_feat*scale, (T, 1)).
    """
    T = num_frames
    N = frame_hw[0] * frame_hw[1]
    inv_scale = 1.0 / (float(T * N) * params["std"])                       # (C,)
    w_eff = jnp.tile(params["w_feat"] * inv_scale[:, None], (T, 1))        # (T*C, F)
    b_eff = params["b_feat"] - (params["mean"] / params["std"]) @ params["w_feat"]
    return {"w_eff": w_eff, "b_eff": b_eff,
            "w_proj": params["w_proj"], "b_proj": params["b_proj"]}


# ----------------------------- wrapper --------------------------------------- #

def video_modality_forward(video, head):
    """video: (B, T, C, H, W) float (f32, or bf16 for half the HBM traffic).
    head: output of fold_head_params(...) — precomputed once.

    Returns (B, embedding_dim) L2-normalized embeddings.
    """
    B, T, C, H, W = video.shape
    N = H * W
    TC = T * C
    F = head["w_eff"].shape[1]
    E = head["w_proj"].shape[1]
    assert head["w_eff"].shape[0] == TC, "head params folded for different T/C"

    # (B, T, C, H, W) -> (B, T*C, H*W): free row-major view, no transpose,
    # no extra HBM pass before the kernel reads the video.
    v = video.reshape(B, TC, N)

    tile_b, tile_n = _pool_tiling(B, TC, N, v.dtype.itemsize)

    out3 = pl.pallas_call(
        _fused_video_kernel,
        out_shape=jax.ShapeDtypeStruct((B, 1, E), jnp.float32),
        grid=(B // tile_b, N // tile_n),
        in_specs=[
            pl.BlockSpec((tile_b, TC, tile_n), lambda i, k: (i, 0, k)),
            pl.BlockSpec((TC, F), lambda i, k: (0, 0)),
            pl.BlockSpec((1, F), lambda i, k: (0, 0)),
            pl.BlockSpec((F, E), lambda i, k: (0, 0)),
            pl.BlockSpec((1, E), lambda i, k: (0, 0)),
        ],
        out_specs=pl.BlockSpec((tile_b, 1, E), lambda i, k: (i, 0, 0)),
        scratch_shapes=[pltpu.VMEM((tile_b, TC, _LANES), jnp.float32)],
        compiler_params=pltpu.CompilerParams(
            dimension_semantics=("parallel", "arbitrary")),
    )(v, head["w_eff"], head["b_eff"], head["w_proj"], head["b_proj"])

    return out3.reshape(B, E)


# ----------------------------- reference (pure JAX) -------------------------- #

def _reference_forward(video, params):
    mean = params["mean"][None, None, :, None, None]
    std = params["std"][None, None, :, None, None]
    pooled = ((video - mean) / std).mean(axis=(1, 3, 4))                  # (B, C)
    feats = jnp.maximum(pooled @ params["w_feat"] + params["b_feat"], 0.0)
    proj = feats @ params["w_proj"] + params["b_proj"]
    nrm = jnp.sqrt(jnp.sum(proj * proj, axis=1, keepdims=True))
    return proj / jnp.maximum(nrm, 1e-12)


# ------------------------------ main ----------------------------------------- #

if __name__ == "__main__":
    key = jax.random.PRNGKey(0)
    k_vid, k_par = jax.random.split(key)

    # Small shapes consistent with the module: batch=2, num_frames=4,
    # channels=3, frame_size=(16, 16); feature_dim=256, embedding_dim=128.
    B, T, C, H, W = 2, 4, 3, 16, 16
    video = jax.random.uniform(k_vid, (B, T, C, H, W), jnp.float32)

    params = init_params(k_par, channels=C, feature_dim=256, embedding_dim=128)
    head = fold_head_params(params, num_frames=T, frame_hw=(H, W))  # once, outside jit

    fwd = jax.jit(video_modality_forward)
    emb = jax.block_until_ready(fwd(video, head))

    assert emb.shape == (B, 128), emb.shape

    # Rows should be (approximately) unit L2 norm.
    norms = jnp.linalg.norm(emb, axis=1)
    assert bool(jnp.all(jnp.abs(norms - 1.0) < 1e-4)), norms

    # Cross-check folding + fused kernel against a pure-JAX reference.
    # (Tolerance covers the reference's own MXU default-precision matmuls.)
    ref = _reference_forward(video, params)
    assert bool(jnp.all(jnp.abs(emb - ref) < 2e-2)), "mismatch vs reference"

    print("KERNEL_OK")
</pallas_src>

<mosaic_0001>
module attributes {stable_mosaic.version = 11 : i64} {
  func.func @_fused_video_kernel(%arg0: i32, %arg1: i32, %arg2: memref<1x12x256xf32, #tpu.memory_space<vmem>>, %arg3: memref<12x256xf32, #tpu.memory_space<vmem>>, %arg4: memref<1x256xf32, #tpu.memory_space<vmem>>, %arg5: memref<256x128xf32, #tpu.memory_space<vmem>>, %arg6: memref<1x128xf32, #tpu.memory_space<vmem>>, %arg7: memref<1x1x128xf32, #tpu.memory_space<vmem>>, %arg8: memref<1x12x128xf32, #tpu.memory_space<vmem>>) attributes {dimension_semantics = [#tpu.dimension_semantics<parallel>, #tpu.dimension_semantics<arbitrary>], iteration_bounds = array<i64: 2, 1>, scalar_prefetch = 0 : i64, scratch_operands = 1 : i64, tpu.core_type = #tpu.core_type<tc>, window_params = [{transform_indices = @transform_0, window_bounds = array<i64: 1, 12, 256>}, {pipeline_mode = #tpu.pipeline_mode<synchronous>, transform_indices = @transform_1, window_bounds = array<i64: 12, 256>}, {pipeline_mode = #tpu.pipeline_mode<synchronous>, transform_indices = @transform_2, window_bounds = array<i64: 1, 256>}, {pipeline_mode = #tpu.pipeline_mode<synchronous>, transform_indices = @transform_3, window_bounds = array<i64: 256, 128>}, {pipeline_mode = #tpu.pipeline_mode<synchronous>, transform_indices = @transform_4, window_bounds = array<i64: 1, 128>}, {transform_indices = @transform_5, window_bounds = array<i64: 1, 1, 128>}]} {
    %c0_i32 = arith.constant 0 : i32
    %0 = arith.cmpi eq, %arg1, %c0_i32 : i32
    %1 = arith.extui %0 : i1 to i32
    %c0_i32_0 = arith.constant 0 : i32
    %2 = arith.cmpi ne, %1, %c0_i32_0 : i32
    scf.if %2 {
      %cst = arith.constant 0.000000e+00 : f32
      %12 = vector.broadcast %cst : f32 to vector<1x12x128xf32>
      %c0_13 = arith.constant 0 : index
      %c0_14 = arith.constant 0 : index
      %c0_15 = arith.constant 0 : index
      %13 = vector.load %arg8[%c0_13, %c0_14, %c0_15] : memref<1x12x128xf32, #tpu.memory_space<vmem>>, vector<1x12x128xf32>
      tpu.vector_store %arg8[%c0_13, %c0_14, %c0_15], %12 {strides = array<i32>} : memref<1x12x128xf32, #tpu.memory_space<vmem>>, vector<1x12x128xf32>,
    } else {
    }
    %c0 = arith.constant 0 : index
    %c0_1 = arith.constant 0 : index
    %c0_2 = arith.constant 0 : index
    %3 = vector.load %arg8[%c0, %c0_1, %c0_2] : memref<1x12x128xf32, #tpu.memory_space<vmem>>, vector<1x12x128xf32>
    %c0_3 = arith.constant 0 : index
    %c0_4 = arith.constant 0 : index
    %c0_5 = arith.constant 0 : index
    %4 = vector.load %arg2[%c0_3, %c0_4, %c0_5] : memref<1x12x256xf32, #tpu.memory_space<vmem>>, vector<1x12x128xf32>
    %5 = arith.addf %3, %4 : vector<1x12x128xf32>
    %c0_6 = arith.constant 0 : index
    %c0_7 = arith.constant 0 : index
    %c128 = arith.constant 128 : index
    %6 = vector.load %arg2[%c0_6, %c0_7, %c128] : memref<1x12x256xf32, #tpu.memory_space<vmem>>, vector<1x12x128xf32>
    %7 = arith.addf %5, %6 : vector<1x12x128xf32>
    %c0_8 = arith.constant 0 : index
    %c0_9 = arith.constant 0 : index
    %c0_10 = arith.constant 0 : index
    %8 = vector.load %arg8[%c0_8, %c0_9, %c0_10] : memref<1x12x128xf32, #tpu.memory_space<vmem>>, vector<1x12x128xf32>
    tpu.vector_store %arg8[%c0_8, %c0_9, %c0_10], %7 {strides = array<i32>} : memref<1x12x128xf32, #tpu.memory_space<vmem>>, vector<1x12x128xf32>,
    %c0_i32_11 = arith.constant 0 : i32
    %9 = arith.cmpi eq, %arg1, %c0_i32_11 : i32
    %10 = arith.extui %9 : i1 to i32
    %c0_i32_12 = arith.constant 0 : i32
    %11 = arith.cmpi ne, %10, %c0_i32_12 : i32
    scf.if %11 {
      %c0_13 = arith.constant 0 : index
      %c0_14 = arith.constant 0 : index
      %c0_15 = arith.constant 0 : index
      %12 = vector.load %arg8[%c0_13, %c0_14, %c0_15] : memref<1x12x128xf32, #tpu.memory_space<vmem>>, vector<1x12x128xf32>
      %cst = arith.constant dense<0.000000e+00> : vector<1x12xf32>
      %13 = vector.multi_reduction <add>, %12, %cst [2] : vector<1x12x128xf32> to vector<1x12xf32>
      %c0_16 = arith.constant 0 : index
      %c0_17 = arith.constant 0 : index
      %14 = vector.load %arg3[%c0_16, %c0_17] : memref<12x256xf32, #tpu.memory_space<vmem>>, vector<12x256xf32>
      %c0_18 = arith.constant 0 : index
      %c0_19 = arith.constant 0 : index
      %15 = vector.load %arg4[%c0_18, %c0_19] : memref<1x256xf32, #tpu.memory_space<vmem>>, vector<1x256xf32>
      %16 = vector.extract_strided_slice %13 {offsets = [0, 0], sizes = [1, 1], strides = [1, 1]} : vector<1x12xf32> to vector<1x1xf32>
      %17 = vector.extract_strided_slice %14 {offsets = [0, 0], sizes = [1, 256], strides = [1, 1]} : vector<12x256xf32> to vector<1x256xf32>
      %18 = vector.broadcast %16 : vector<1x1xf32> to vector<1x256xf32>
      %19 = arith.mulf %18, %17 : vector<1x256xf32>
      %20 = arith.addf %15, %19 : vector<1x256xf32>
      %21 = vector.extract_strided_slice %13 {offsets = [0, 1], sizes = [1, 1], strides = [1, 1]} : vector<1x12xf32> to vector<1x1xf32>
      %22 = vector.extract_strided_slice %14 {offsets = [1, 0], sizes = [1, 256], strides = [1, 1]} : vector<12x256xf32> to vector<1x256xf32>
      %23 = vector.broadcast %21 : vector<1x1xf32> to vector<1x256xf32>
      %24 = arith.mulf %23, %22 : vector<1x256xf32>
      %25 = arith.addf %20, %24 : vector<1x256xf32>
      %26 = vector.extract_strided_slice %13 {offsets = [0, 2], sizes = [1, 1], strides = [1, 1]} : vector<1x12xf32> to vector<1x1xf32>
      %27 = vector.extract_strided_slice %14 {offsets = [2, 0], sizes = [1, 256], strides = [1, 1]} : vector<12x256xf32> to vector<1x256xf32>
      %28 = vector.broadcast %26 : vector<1x1xf32> to vector<1x256xf32>
      %29 = arith.mulf %28, %27 : vector<1x256xf32>
      %30 = arith.addf %25, %29 : vector<1x256xf32>
      %31 = vector.extract_strided_slice %13 {offsets = [0, 3], sizes = [1, 1], strides = [1, 1]} : vector<1x12xf32> to vector<1x1xf32>
      %32 = vector.extract_strided_slice %14 {offsets = [3, 0], sizes = [1, 256], strides = [1, 1]} : vector<12x256xf32> to vector<1x256xf32>
      %33 = vector.broadcast %31 : vector<1x1xf32> to vector<1x256xf32>
      %34 = arith.mulf %33, %32 : vector<1x256xf32>
      %35 = arith.addf %30, %34 : vector<1x256xf32>
      %36 = vector.extract_strided_slice %13 {offsets = [0, 4], sizes = [1, 1], strides = [1, 1]} : vector<1x12xf32> to vector<1x1xf32>
      %37 = vector.extract_strided_slice %14 {offsets = [4, 0], sizes = [1, 256], strides = [1, 1]} : vector<12x256xf32> to vector<1x256xf32>
      %38 = vector.broadcast %36 : vector<1x1xf32> to vector<1x256xf32>
      %39 = arith.mulf %38, %37 : vector<1x256xf32>
      %40 = arith.addf %35, %39 : vector<1x256xf32>
      %41 = vector.extract_strided_slice %13 {offsets = [0, 5], sizes = [1, 1], strides = [1, 1]} : vector<1x12xf32> to vector<1x1xf32>
      %42 = vector.extract_strided_slice %14 {offsets = [5, 0], sizes = [1, 256], strides = [1, 1]} : vector<12x256xf32> to vector<1x256xf32>
      %43 = vector.broadcast %41 : vector<1x1xf32> to vector<1x256xf32>
      %44 = arith.mulf %43, %42 : vector<1x256xf32>
      %45 = arith.addf %40, %44 : vector<1x256xf32>
      %46 = vector.extract_strided_slice %13 {offsets = [0, 6], sizes = [1, 1], strides = [1, 1]} : vector<1x12xf32> to vector<1x1xf32>
      %47 = vector.extract_strided_slice %14 {offsets = [6, 0], sizes = [1, 256], strides = [1, 1]} : vector<12x256xf32> to vector<1x256xf32>
      %48 = vector.broadcast %46 : vector<1x1xf32> to vector<1x256xf32>
      %49 = arith.mulf %48, %47 : vector<1x256xf32>
      %50 = arith.addf %45, %49 : vector<1x256xf32>
      %51 = vector.extract_strided_slice %13 {offsets = [0, 7], sizes = [1, 1], strides = [1, 1]} : vector<1x12xf32> to vector<1x1xf32>
      %52 = vector.extract_strided_slice %14 {offsets = [7, 0], sizes = [1, 256], strides = [1, 1]} : vector<12x256xf32> to vector<1x256xf32>
      %53 = vector.broadcast %51 : vector<1x1xf32> to vector<1x256xf32>
      %54 = arith.mulf %53, %52 : vector<1x256xf32>
      %55 = arith.addf %50, %54 : vector<1x256xf32>
      %56 = vector.extract_strided_slice %13 {offsets = [0, 8], sizes = [1, 1], strides = [1, 1]} : vector<1x12xf32> to vector<1x1xf32>
      %57 = vector.extract_strided_slice %14 {offsets = [8, 0], sizes = [1, 256], strides = [1, 1]} : vector<12x256xf32> to vector<1x256xf32>
      %58 = vector.broadcast %56 : vector<1x1xf32> to vector<1x256xf32>
      %59 = arith.mulf %58, %57 : vector<1x256xf32>
      %60 = arith.addf %55, %59 : vector<1x256xf32>
      %61 = vector.extract_strided_slice %13 {offsets = [0, 9], sizes = [1, 1], strides = [1, 1]} : vector<1x12xf32> to vector<1x1xf32>
      %62 = vector.extract_strided_slice %14 {offsets = [9, 0], sizes = [1, 256], strides = [1, 1]} : vector<12x256xf32> to vector<1x256xf32>
      %63 = vector.broadcast %61 : vector<1x1xf32> to vector<1x256xf32>
      %64 = arith.mulf %63, %62 : vector<1x256xf32>
      %65 = arith.addf %60, %64 : vector<1x256xf32>
      %66 = vector.extract_strided_slice %13 {offsets = [0, 10], sizes = [1, 1], strides = [1, 1]} : vector<1x12xf32> to vector<1x1xf32>
      %67 = vector.extract_strided_slice %14 {offsets = [10, 0], sizes = [1, 256], strides = [1, 1]} : vector<12x256xf32> to vector<1x256xf32>
      %68 = vector.broadcast %66 : vector<1x1xf32> to vector<1x256xf32>
      %69 = arith.mulf %68, %67 : vector<1x256xf32>
      %70 = arith.addf %65, %69 : vector<1x256xf32>
      %71 = vector.extract_strided_slice %13 {offsets = [0, 11], sizes = [1, 1], strides = [1, 1]} : vector<1x12xf32> to vector<1x1xf32>
      %72 = vector.extract_strided_slice %14 {offsets = [11, 0], sizes = [1, 256], strides = [1, 1]} : vector<12x256xf32> to vector<1x256xf32>
      %73 = vector.broadcast %71 : vector<1x1xf32> to vector<1x256xf32>
      %74 = arith.mulf %73, %72 : vector<1x256xf32>
      %75 = arith.addf %70, %74 : vector<1x256xf32>
      %cst_20 = arith.constant 0.000000e+00 : f32
      %76 = vector.broadcast %cst_20 : f32 to vector<1x256xf32>
      %77 = arith.maximumf %75, %76 : vector<1x256xf32>
      %c0_21 = arith.constant 0 : index
      %c0_22 = arith.constant 0 : index
      %78 = vector.load %arg5[%c0_21, %c0_22] : memref<256x128xf32, #tpu.memory_space<vmem>>, vector<256x128xf32>
      %cst_23 = arith.constant dense<0.000000e+00> : vector<1x128xf32>
      %79 = tpu.matmul %77, %78, %cst_23 {dimension_numbers = #tpu.dot_dimension_numbers<[1], [0], [0], [1], [0, 0, 1, 1], [], []>} : vector<1x256xf32>, vector<256x128xf32>, vector<1x128xf32> -> vector<1x128xf32>
      %c0_24 = arith.constant 0 : index
      %c0_25 = arith.constant 0 : index
      %80 = vector.load %arg6[%c0_24, %c0_25] : memref<1x128xf32, #tpu.memory_space<vmem>>, vector<1x128xf32>
      %81 = arith.addf %79, %80 : vector<1x128xf32>
      %82 = arith.mulf %81, %81 : vector<1x128xf32>
      %cst_26 = arith.constant dense<0.000000e+00> : vector<1xf32>
      %83 = vector.multi_reduction <add>, %82, %cst_26 [1] : vector<1x128xf32> to vector<1xf32>
      %84 = vector.shape_cast %83 : vector<1xf32> to vector<1x1xf32>
      %cst_27 = arith.constant 1.000000e-24 : f32
      %85 = vector.broadcast %cst_27 : f32 to vector<1x1xf32>
      %86 = arith.maximumf %84, %85 : vector<1x1xf32>
      %87 = math.rsqrt %86 : vector<1x1xf32>
      %88 = vector.broadcast %87 : vector<1x1xf32> to vector<1x128xf32>
      %89 = arith.mulf %81, %88 : vector<1x128xf32>
      %90 = vector.shape_cast %89 : vector<1x128xf32> to vector<1x1x128xf32>
      %c0_28 = arith.constant 0 : index
      %c0_29 = arith.constant 0 : index
      %c0_30 = arith.constant 0 : index
      %91 = vector.load %arg7[%c0_28, %c0_29, %c0_30] : memref<1x1x128xf32, #tpu.memory_space<vmem>>, vector<1x1x128xf32>
      tpu.vector_store %arg7[%c0_28, %c0_29, %c0_30], %90 {strides = array<i32>} : memref<1x1x128xf32, #tpu.memory_space<vmem>>, vector<1x1x128xf32>,
    } else {
    }
    return
  }
  func.func @transform_0(%arg0: i32, %arg1: i32) -> (i32, i32, i32) {
    %c0_i32 = arith.constant 0 : i32
    %c0_i32_0 = arith.constant 0 : i32
    return %arg0, %c0_i32, %arg1 : i32, i32, i32
  }
  func.func @transform_1(%arg0: i32, %arg1: i32) -> (i32, i32) {
    %c0_i32 = arith.constant 0 : i32
    %c0_i32_0 = arith.constant 0 : i32
    %c0_i32_1 = arith.constant 0 : i32
    return %c0_i32, %c0_i32_0 : i32, i32
  }
  func.func @transform_2(%arg0: i32, %arg1: i32) -> (i32, i32) {
    %c0_i32 = arith.constant 0 : i32
    %c0_i32_0 = arith.constant 0 : i32
    %c0_i32_1 = arith.constant 0 : i32
    return %c0_i32, %c0_i32_0 : i32, i32
  }
  func.func @transform_3(%arg0: i32, %arg1: i32) -> (i32, i32) {
    %c0_i32 = arith.constant 0 : i32
    %c0_i32_0 = arith.constant 0 : i32
    %c0_i32_1 = arith.constant 0 : i32
    return %c0_i32, %c0_i32_0 : i32, i32
  }
  func.func @transform_4(%arg0: i32, %arg1: i32) -> (i32, i32) {
    %c0_i32 = arith.constant 0 : i32
    %c0_i32_0 = arith.constant 0 : i32
    %c0_i32_1 = arith.constant 0 : i32
    return %c0_i32, %c0_i32_0 : i32, i32
  }
  func.func @transform_5(%arg0: i32, %arg1: i32) -> (i32, i32, i32) {
    %c0_i32 = arith.constant 0 : i32
    %c0_i32_0 = arith.constant 0 : i32
    %c0_i32_1 = arith.constant 0 : i32
    return %arg0, %c0_i32, %c0_i32_0 : i32, i32, i32
  }
}

</mosaic_0001>

<llo_original>
// kernel: video_modality_forward.1
$region0: #{video_modality_forward.1}
  #allocation0 [shape = 'u32[]', space=smem, size = 0x4, offset = 0x4, fixed_abs, tag = 'smem constant byte address 0x4 - core index']
  #allocation1 [shape = 'u32[144,128]{1,0:T(1,128)}', space=vmem, size = 0x12000, scoped, tag = 'internal scratch']
  #allocation2 [shape = 'f32[1,12,128]{2,1,0:T(8,128)}', space=vmem, size = 0x2000, scoped, tag = 'scratch operand']
  %s0 = inlined_call_operand.vmem [shape: f32[2,12,256], index: 0, kind: input, shape index: {}]
  %s1 = inlined_call_operand.vmem [shape: f32[12,256], index: 1, kind: input, shape index: {}]
  %s2 = inlined_call_operand.vmem [shape: f32[1,256], index: 2, kind: input, shape index: {}]
  %s3 = inlined_call_operand.vmem [shape: f32[256,128], index: 3, kind: input, shape index: {}]
  %s4 = inlined_call_operand.vmem [shape: f32[1,128], index: 4, kind: input, shape index: {}]
  %s5 = inlined_call_operand.hbm [shape: f32[2,1,128], index: 5, kind: output, shape index: {}]
  %s6 = sld [smem:[#allocation0]]
  $region61: #{video_modality_forward.1} parent=0
    _
  %s8 = ssub.s32 1, %s6
  %s9 = scalar_select 0, %s8, %s6
  $region1: #{video_modality_forward.1} parent=0
    #allocation3 [shape = 'u8[1024]{0}', space=vmem, size = 0x400, scoped, tag = 'output window, operand 0']
    #allocation4 [shape = 's32[2]{0}', space=sflag, size = 0x8, scoped, tag = 'scoped memory for video_modality_forward.1']
    %10 = vsyncpa [#allocation4], 0
    %s11 = scalar_lea.sflag [#allocation4], 1
    %12 = vsyncpa %s11, 0
    loop: start=0, step=1, limit=4
    $region2: #{video_modality_forward.1} parent=1 // loop_pre_header
      _
    $region3: #{video_modality_forward.1} parent=1 // loop_header
      %s14 = sphi 0, %s18
      %p15 = scmp.ge.s32.totalorder %s14, 4
      %s21 = sphi 0, %s33
      %s22 = sphi 0, %s29
      %s23 = sphi 0, %s21
      %s24 = sphi 0, %s22
      %s25 = sphi 0, %s23
      %s26 = sphi 0, %s24
      %s38 = sphi 0, %s40
      %s41 = sphi 0, %s38
      %s42 = sphi 0, %s41
      %s58 = sphi 0, %s42
      %s62 = sphi 0, %s62
      %s64 = sphi 0, %s62
      %s65 = sphi 0, %s64
      %s79 = sphi 0, %s65
      %s83 = sphi 0, %s83
      %s85 = sphi 0, %s83
      %s86 = sphi 0, %s85
      %s100 = sphi 0, %s86
      %s104 = sphi 0, %s104
      %s106 = sphi 0, %s104
      %s107 = sphi 0, %s106
      %s121 = sphi 0, %s107
      %s125 = sphi 0, %s125
      %s127 = sphi 0, %s125
      %s128 = sphi 0, %s127
      %s142 = sphi 0, %s128
      %s148 = sphi 0, %s150
      %s151 = sphi 0, %s148
      %s152 = sphi 0, %s151
      %s168 = sphi 0, %s152
    $region4: #{video_modality_forward.1} parent=1 // loop_header_branch
      %17 = sbr.rel (%p15) target = $region8
    $region5: #{video_modality_forward.1} parent=1 // loop_body
      %s19 = ssub.s32 %s14, 1
      %s20 = ssub.s32 %s14, 2
      %s27 = sadd.s32 1, %s22
      %p28 = scmp.ge.s32.totalorder %s27, 1
      %s29 = scalar_select %p28, 0, %s27
      %s30 = sadd.s32 1, %s21
      %s31 = scalar_select %p28, %s30, %s21
      %p32 = scmp.ge.s32.totalorder %s31, 2
      %s33 = scalar_select %p32, 0, %s31
      %s34 = ssub.s32 %s21, %s33
      %s35 = ssub.s32 %s22, %s29
      %s36 = sor.u32 %s34, %s35
      %p37 = scmp.eq.s32.totalorder %s36, 0
      %s39 = sadd.s32 %s38, 1
      %s40 = scalar_select %p37, %s38, %s39
      %p43 = pneg %p37
      %p44 = scmp.eq.s32.totalorder %s14, 1
      %p45 = por %p43, %p44
      %p46 = scmp.ne.s32.totalorder %s38, %s41
      %p47 = scmp.eq.s32.totalorder %s14, 0
      %p48 = por %p46, %p47
      %p49 = scmp.ne.s32.totalorder %s38, %s41
      %p50 = scmp.eq.s32.totalorder %s19, 1
      %p51 = por %p49, %p50
      %p52 = scmp.ne.s32.totalorder %s41, %s42
      %p53 = scmp.eq.s32.totalorder %s19, 0
      %p54 = por %p52, %p53
      %p55 = scmp.ne.s32.totalorder %s41, %s42
      %p56 = scmp.eq.s32.totalorder %s20, 1
      %p57 = por %p55, %p56
      %p59 = scmp.ne.s32.totalorder %s42, %s58
      %p60 = scmp.eq.s32.totalorder %s20, 0
      %p61 = por %p59, %p60
      %s63 = sadd.s32 %s62, 1
      %p66 = scmp.eq.s32.totalorder %s14, 1
      %p67 = scmp.ne.s32.totalorder %s62, %s64
      %p68 = scmp.eq.s32.totalorder %s14, 0
      %p69 = por %p67, %p68
      %p70 = scmp.ne.s32.totalorder %s62, %s64
      %p71 = scmp.eq.s32.totalorder %s19, 1
      %p72 = por %p70, %p71
      %p73 = scmp.ne.s32.totalorder %s64, %s65
      %p74 = scmp.eq.s32.totalorder %s19, 0
      %p75 = por %p73, %p74
      %p76 = scmp.ne.s32.totalorder %s64, %s65
      %p77 = scmp.eq.s32.totalorder %s20, 1
      %p78 = por %p76, %p77
      %p80 = scmp.ne.s32.totalorder %s65, %s79
      %p81 = scmp.eq.s32.totalorder %s20, 0
      %p82 = por %p80, %p81
      %s84 = sadd.s32 %s83, 1
      %p87 = scmp.eq.s32.totalorder %s14, 1
      %p88 = scmp.ne.s32.totalorder %s83, %s85
      %p89 = scmp.eq.s32.totalorder %s14, 0
      %p90 = por %p88, %p89
      %p91 = scmp.ne.s32.totalorder %s83, %s85
      %p92 = scmp.eq.s32.totalorder %s19, 1
      %p93 = por %p91, %p92
      %p94 = scmp.ne.s32.totalorder %s85, %s86
      %p95 = scmp.eq.s32.totalorder %s19, 0
      %p96 = por %p94, %p95
      %p97 = scmp.ne.s32.totalorder %s85, %s86
      %p98 = scmp.eq.s32.totalorder %s20, 1
      %p99 = por %p97, %p98
      %p101 = scmp.ne.s32.totalorder %s86, %s100
      %p102 = scmp.eq.s32.totalorder %s20, 0
      %p103 = por %p101, %p102
      %s105 = sadd.s32 %s104, 1
      %p108 = scmp.eq.s32.totalorder %s14, 1
      %p109 = scmp.ne.s32.totalorder %s104, %s106
      %p110 = scmp.eq.s32.totalorder %s14, 0
      %p111 = por %p109, %p110
      %p112 = scmp.ne.s32.totalorder %s104, %s106
      %p113 = scmp.eq.s32.totalorder %s19, 1
      %p114 = por %p112, %p113
      %p115 = scmp.ne.s32.totalorder %s106, %s107
      %p116 = scmp.eq.s32.totalorder %s19, 0
      %p117 = por %p115, %p116
      %p118 = scmp.ne.s32.totalorder %s106, %s107
      %p119 = scmp.eq.s32.totalorder %s20, 1
      %p120 = por %p118, %p119
      %p122 = scmp.ne.s32.totalorder %s107, %s121
      %p123 = scmp.eq.s32.totalorder %s20, 0
      %p124 = por %p122, %p123
      %s126 = sadd.s32 %s125, 1
      %p129 = scmp.eq.s32.totalorder %s14, 1
      %p130 = scmp.ne.s32.totalorder %s125, %s127
      %p131 = scmp.eq.s32.totalorder %s14, 0
      %p132 = por %p130, %p131
      %p133 = scmp.ne.s32.totalorder %s125, %s127
      %p134 = scmp.eq.s32.totalorder %s19, 1
      %p135 = por %p133, %p134
      %p136 = scmp.ne.s32.totalorder %s127, %s128
      %p137 = scmp.eq.s32.totalorder %s19, 0
      %p138 = por %p136, %p137
      %p139 = scmp.ne.s32.totalorder %s127, %s128
      %p140 = scmp.eq.s32.totalorder %s20, 1
      %p141 = por %p139, %p140
      %p143 = scmp.ne.s32.totalorder %s128, %s142
      %p144 = scmp.eq.s32.totalorder %s20, 0
      %p145 = por %p143, %p144
      %s146 = ssub.s32 %s21, %s33
      %p147 = scmp.eq.s32.totalorder %s146, 0
      %s149 = sadd.s32 %s148, 1
      %s150 = scalar_select %p147, %s148, %s149
      %p153 = pneg %p147
      %p154 = scmp.eq.s32.totalorder %s14, 1
      %p155 = por %p153, %p154
      %p156 = scmp.ne.s32.totalorder %s148, %s151
      %p157 = scmp.eq.s32.totalorder %s14, 0
      %p158 = por %p156, %p157
      %p159 = scmp.ne.s32.totalorder %s148, %s151
      %p160 = scmp.eq.s32.totalorder %s19, 1
      %p161 = por %p159, %p160
      %p162 = scmp.ne.s32.totalorder %s151, %s152
      %p163 = scmp.eq.s32.totalorder %s19, 0
      %p164 = por %p162, %p163
      %p165 = scmp.ne.s32.totalorder %s151, %s152
      %p166 = scmp.eq.s32.totalorder %s20, 1
      %p167 = por %p165, %p166
      %p169 = scmp.ne.s32.totalorder %s152, %s168
      %p170 = scmp.eq.s32.totalorder %s20, 0
      %p171 = por %p169, %p170
      %p172 = scmp.le.s32.totalorder 1, %s14
      %p173 = scmp.lt.s32.totalorder %s14, 3
      %p174 = pnand %p172, %p173
      %p175 = pneg %p174
      // Predicated region
      $region9: #{video_modality_forward.1} parent=5 // pred_check
        _
      $region10: #{video_modality_forward.1} parent=5 // pred_check_branch
        %177 = sbr.rel (%p174) target = $region12
      $region11: #{video_modality_forward.1} parent=5 // pred_region
        %s178 = ssub.s32 %s14, 1
        // Predicated region
        $region13: #{video_modality_forward.1} parent=11 // pred_check
          %p179 = pneg %p75
        $region14: #{video_modality_forward.1} parent=11 // pred_check_branch
          %181 = sbr.rel (%p179) target = $region16
        $region15: #{video_modality_forward.1} parent=11 // pred_region
          _
        $region16: #{video_modality_forward.1} parent=11 // pred_fallthru
          _
        // Predicated region
        $region17: #{video_modality_forward.1} parent=11 // pred_check
          %p182 = pneg %p96
        $region18: #{video_modality_forward.1} parent=11 // pred_check_branch
          %184 = sbr.rel (%p182) target = $region20
        $region19: #{video_modality_forward.1} parent=11 // pred_region
          _
        $region20: #{video_modality_forward.1} parent=11 // pred_fallthru
          _
        // Predicated region
        $region21: #{video_modality_forward.1} parent=11 // pred_check
          %p185 = pneg %p117
        $region22: #{video_modality_forward.1} parent=11 // pred_check_branch
          %187 = sbr.rel (%p185) target = $region24
        $region23: #{video_modality_forward.1} parent=11 // pred_region
          _
        $region24: #{video_modality_forward.1} parent=11 // pred_fallthru
          _
        // Predicated region
        $region25: #{video_modality_forward.1} parent=11 // pred_check
          %p188 = pneg %p138
        $region26: #{video_modality_forward.1} parent=11 // pred_check_branch
          %190 = sbr.rel (%p188) target = $region28
        $region27: #{video_modality_forward.1} parent=11 // pred_region
          _
        $region28: #{video_modality_forward.1} parent=11 // pred_fallthru
          _
      $region12: #{video_modality_forward.1} parent=5 // pred_fallthru
        _
      %p191 = scmp.lt.s32.totalorder %s14, 2
      // Predicated region
      $region29: #{video_modality_forward.1} parent=5 // pred_check
        %p192 = pneg %p191
      $region30: #{video_modality_forward.1} parent=5 // pred_check_branch
        %194 = sbr.rel (%p192) target = $region32
      $region31: #{video_modality_forward.1} parent=5 // pred_region
        // Predicated region
        $region33: #{video_modality_forward.1} parent=31 // pred_check
          %p195 = pneg %p48
        $region34: #{video_modality_forward.1} parent=31 // pred_check_branch
          %197 = sbr.rel (%p195) target = $region36
        $region35: #{video_modality_forward.1} parent=31 // pred_region
          %s198 = smul.u32 2, %s22
          %p199 = scmp.lt.s32.totalorder %s21, 1
          %s200 = scalar_select %p199, %s21, 1
          %p201 = scmp.lt.s32.totalorder %s198, 1
          %s202 = scalar_select %p201, %s198, 1
          %s203 = smul.addr %s200, 4
          %s204 = sadd.s32 %s202, %s203
          %s205 = smul.addr %s204, 8
          %s206 = scalar_lea.vmem %s0, %s205
          %s207 = smul.u32 2, %s22
        $region36: #{video_modality_forward.1} parent=31 // pred_fallthru
          _
      $region32: #{video_modality_forward.1} parent=5 // pred_fallthru
        _
      %p208 = scmp.le.s32.totalorder 1, %s14
      %p209 = scmp.lt.s32.totalorder %s14, 3
      %p210 = pnand %p208, %p209
      %p211 = pneg %p210
      // Predicated region
      $region37: #{video_modality_forward.1} parent=5 // pred_check
        _
      $region38: #{video_modality_forward.1} parent=5 // pred_check_branch
        %213 = sbr.rel (%p210) target = $region40
      $region39: #{video_modality_forward.1} parent=5 // pred_region
        %s214 = ssub.s32 %s14, 1
        %s215 = smul.u32 2, %s24
        %p216 = scmp.lt.s32.totalorder %s23, 1
        %s217 = scalar_select %p216, %s23, 1
        %p218 = scmp.lt.s32.totalorder %s215, 1
        %s219 = scalar_select %p218, %s215, 1
        %s220 = smul.addr %s217, 4
        %s221 = sadd.s32 %s219, %s220
        %s222 = smul.addr %s221, 8
        %s223 = scalar_lea.vmem %s0, %s222
        %p224 = pneg %p54
        %p225 = pneg %p51
        %p226 = pneg %p75
        %p227 = pneg %p72
        %p228 = pneg %p96
        %p229 = pneg %p93
        %p230 = pneg %p117
        %p231 = pneg %p114
        %p232 = pneg %p138
        %p233 = pneg %p135
        %p234 = pneg %p164
        %p235 = pneg %p161
        %s236 = sand.u32 %s151, 1
        %s237 = scalar_lea.sflag [#allocation4], %s236
        %s238 = sand.u32 %s151, 1
        %s239 = scalar_lea.vmem [#allocation3], %s238
        %s240 = smul.u32 2, %s24
        %p241 = scmp.lt.s32.totalorder %s23, 1
        %s242 = scalar_select %p241, %s23, 1
        %p243 = scmp.lt.s32.totalorder %s240, 1
        %s244 = scalar_select %p243, %s240, 1
        %s245 = smul.addr %s242, 4
        %s246 = sadd.s32 %s244, %s245
        %s247 = smul.addr %s246, 8
        %s248 = scalar_lea.vmem %s0, %s247
        %s249 = smul.u32 2, %s24
        %p250 = scmp.eq.s32.totalorder %s24, 0
        // Predicated region
        $region41: #{video_modality_forward.1} parent=39 // pred_check
          %p251 = pneg %p250
        $region42: #{video_modality_forward.1} parent=39 // pred_check_branch
          %253 = sbr.rel (%p251) target = $region44
        $region43: #{video_modality_forward.1} parent=39 // pred_region
          %254 = vst [vmem:[#allocation2] sm:$0xff] 0.0
          %255 = vst [vmem:[#allocation2 + $0x8] sm:$0xf] 0.0
        $region44: #{video_modality_forward.1} parent=39 // pred_fallthru
          _
        %v256 = vld [vmem:[#allocation2] sm:$0xff]
        %v257 = vld [vmem:[#allocation2 + $0x8] sm:$0xf]
        %v258 = vld [vmem:[%s248] sm:$0xff]
        %v259 = vld [vmem:[%s248 + $0x10] sm:$0xf]
        %v260 = vadd.f32 %v256, %v258
        %v261 = vadd.f32 %v257, %v259
        %v262 = vld [vmem:[%s248 + $0x8] sm:$0xff]
        %v263 = vld [vmem:[%s248 + $0x18] sm:$0xf]
        %v264 = vadd.f32 %v260, %v262
        %v265 = vadd.f32 %v261, %v263
        %266 = vst [vmem:[#allocation2] sm:$0xff] %v264
        %267 = vst [vmem:[#allocation2 + $0x8] sm:$0xf] %v265
        // Predicated region
        $region45: #{video_modality_forward.1} parent=39 // pred_check
          %p268 = pneg %p250
        $region46: #{video_modality_forward.1} parent=39 // pred_check_branch
          %270 = sbr.rel (%p268) target = $region48
        $region47: #{video_modality_forward.1} parent=39 // pred_region
          %v271 = vld [vmem:[#allocation2] sm:$0xff]
          %v272 = vld [vmem:[#allocation2 + $0x8] sm:$0xf]
          %273 = vadd.xlane.f32.xlu0 %v271
          %v274 = vpop.xlane.xlu0 %273
          %vm275 = vcmask 1043456
          %v276 = vsel %vm275, %v272, 0.0
          %277 = vadd.xlane.f32.xlu0 %v276
          %v278 = vpop.xlane.xlu0 %277
          %v279 = vld [vmem:[%s1] sm:$0xff]
          %v280 = vld [vmem:[%s1 + $0x8] sm:$0xff]
          %v281 = vld [vmem:[%s1 + $0x10] sm:$0xf]
          %v282 = vld [vmem:[%s1 + $0x18] sm:$0xf]
          %v283 = vld [vmem:[%s2] sm:$0x3]
          %v284 = vmul.f32 %v274, %v279
          %v285 = vmul.f32 %v274, %v280
          %v288 = vcombine.low %v284, %v285
          %v290 = vunpack.c.l.s4 1966171168
          %v291 = vunpack.c.0.s8 %v290
          %v292 = vlaneseq
          %v293 = vshrl.u32 %v292, 7
          %v294 = vsub.s32 %v291, %v293
          %v295 = vrot.slane %v288, %v294
          %v297 = vunpack.c.l.s4 1966171168
          %v298 = vunpack.c.0.s8 %v297
          %v299 = vlaneseq
          %v300 = vshrl.u32 %v299, 7
          %v301 = vsub.s32 %v298, %v300
          %v302 = vrot.slane %v295, %v301
          %v304 = vadd.f32 %v283, %v302
          %v305 = vcombine.high %v295, %v295
          %v307 = vunpack.c.l.s4 1966171168
          %v308 = vunpack.c.0.s8 %v307
          %v309 = vlaneseq
          %v310 = vshrl.u32 %v309, 7
          %v311 = vsub.s32 %v308, %v310
          %v312 = vrot.slane %v305, %v311
          %v314 = vadd.f32 %v304, %v312
          %v315 = vcombine.high %v302, %v302
          %v317 = vadd.f32 %v314, %v315
          %v318 = vcombine.high %v312, %v312
          %v320 = vadd.f32 %v317, %v318
          %v321 = vcombine.high %v284, %v285
          %v323 = vunpack.c.l.s4 1966171168
          %v324 = vunpack.c.0.s8 %v323
          %v325 = vlaneseq
          %v326 = vshrl.u32 %v325, 7
          %v327 = vsub.s32 %v324, %v326
          %v328 = vrot.slane %v321, %v327
          %v330 = vunpack.c.l.s4 1966171168
          %v331 = vunpack.c.0.s8 %v330
          %v332 = vlaneseq
          %v333 = vshrl.u32 %v332, 7
          %v334 = vsub.s32 %v331, %v333
          %v335 = vrot.slane %v328, %v334
          %v337 = vadd.f32 %v320, %v335
          %v338 = vcombine.high %v328, %v328
          %v340 = vunpack.c.l.s4 1966171168
          %v341 = vunpack.c.0.s8 %v340
          %v342 = vlaneseq
          %v343 = vshrl.u32 %v342, 7
          %v344 = vsub.s32 %v341, %v343
          %v345 = vrot.slane %v338, %v344
          %v347 = vadd.f32 %v337, %v345
          %v348 = vcombine.high %v335, %v335
          %v350 = vadd.f32 %v347, %v348
          %v351 = vcombine.high %v345, %v345
          %v353 = vadd.f32 %v350, %v351
          %v354 = vmul.f32 %v278, %v281
          %v355 = vmul.f32 %v278, %v282
          %v358 = vcombine.low %v354, %v355
          %v360 = vunpack.c.l.s4 1966171168
          %v361 = vunpack.c.0.s8 %v360
          %v362 = vlaneseq
          %v363 = vshrl.u32 %v362, 7
          %v364 = vsub.s32 %v361, %v363
          %v365 = vrot.slane %v358, %v364
          %v367 = vunpack.c.l.s4 1966171168
          %v368 = vunpack.c.0.s8 %v367
          %v369 = vlaneseq
          %v370 = vshrl.u32 %v369, 7
          %v371 = vsub.s32 %v368, %v370
          %v372 = vrot.slane %v365, %v371
          %v374 = vadd.f32 %v353, %v372
          %v375 = vcombine.high %v365, %v365
          %v377 = vunpack.c.l.s4 1966171168
          %v378 = vunpack.c.0.s8 %v377
          %v379 = vlaneseq
          %v380 = vshrl.u32 %v379, 7
          %v381 = vsub.s32 %v378, %v380
          %v382 = vrot.slane %v375, %v381
          %v384 = vadd.f32 %v374, %v382
          %v385 = vcombine.high %v372, %v372
          %v387 = vadd.f32 %v384, %v385
          %v388 = vcombine.high %v382, %v382
          %v390 = vadd.f32 %v387, %v388
          %v391 = vmax.f32 %v390, 0.0
          %v392 = vld [vmem:[%s3] sm:$0xff]
          %v393 = vld [vmem:[%s3 + $0x8] sm:$0xff]
          %v394 = vld [vmem:[%s3 + $0x10] sm:$0xff]
          %v395 = vld [vmem:[%s3 + $0x18] sm:$0xff]
          %v396 = vld [vmem:[%s3 + $0x20] sm:$0xff]
          %v397 = vld [vmem:[%s3 + $0x28] sm:$0xff]
          %v398 = vld [vmem:[%s3 + $0x30] sm:$0xff]
          %v399 = vld [vmem:[%s3 + $0x38] sm:$0xff]
          %v400 = vld [vmem:[%s3 + $0x40] sm:$0xff]
          %v401 = vld [vmem:[%s3 + $0x48] sm:$0xff]
          %v402 = vld [vmem:[%s3 + $0x50] sm:$0xff]
          %v403 = vld [vmem:[%s3 + $0x58] sm:$0xff]
          %v404 = vld [vmem:[%s3 + $0x60] sm:$0xff]
          %v405 = vld [vmem:[%s3 + $0x68] sm:$0xff]
          %v406 = vld [vmem:[%s3 + $0x70] sm:$0xff]
          %v407 = vld [vmem:[%s3 + $0x78] sm:$0xff]
          %v408 = vld [vmem:[%s3 + $0x80] sm:$0xff]
          %v409 = vld [vmem:[%s3 + $0x88] sm:$0xff]
          %v410 = vld [vmem:[%s3 + $0x90] sm:$0xff]
          %v411 = vld [vmem:[%s3 + $0x98] sm:$0xff]
          %v412 = vld [vmem:[%s3 + $0xa0] sm:$0xff]
          %v413 = vld [vmem:[%s3 + $0xa8] sm:$0xff]
          %v414 = vld [vmem:[%s3 + $0xb0] sm:$0xff]
          %v415 = vld [vmem:[%s3 + $0xb8] sm:$0xff]
          %v416 = vld [vmem:[%s3 + $0xc0] sm:$0xff]
          %v417 = vld [vmem:[%s3 + $0xc8] sm:$0xff]
          %v418 = vld [vmem:[%s3 + $0xd0] sm:$0xff]
          %v419 = vld [vmem:[%s3 + $0xd8] sm:$0xff]
          %v420 = vld [vmem:[%s3 + $0xe0] sm:$0xff]
          %v421 = vld [vmem:[%s3 + $0xe8] sm:$0xff]
          %v422 = vld [vmem:[%s3 + $0xf0] sm:$0xff]
          %v423 = vld [vmem:[%s3 + $0xf8] sm:$0xff]
          %v424 = vld [vmem:[%s4] sm:$0x1]
          %v426 = vlaneseq
          %v427 = vshrl.u32 %v426, 7
          %v428 = vsub.s32 0, %v427
          %v429 = vrot.slane %v391, %v428
          %v430 = vlaneseq
          %v431 = vshrl.u32 %v430, 7
          %v432 = vsub.s32 1, %v431
          %v433 = vrot.slane %v391, %v432
          %436 = vmatprep.subr.mxu0 0.0
          %437 = vmatpush1.msra.mxu0 %v392
          %438 = vmatprep.subr.mxu0 0.0
          %439 = vmatpush1.msra.mxu0 %v393
          %440 = vmatprep.subr.mxu0 0.0
          %441 = vmatpush1.msra.mxu0 %v394
          %442 = vmatprep.subr.mxu0 0.0
          %443 = vmatpush1.msra.mxu0 %v395
          %444 = vmatprep.subr.mxu0 0.0
          %445 = vmatpush1.msra.mxu0 %v396
          %446 = vmatprep.subr.mxu0 0.0
          %447 = vmatpush1.msra.mxu0 %v397
          %448 = vmatprep.subr.mxu0 0.0
          %449 = vmatpush1.msra.mxu0 %v398
          %450 = vmatprep.subr.mxu0 0.0
          %451 = vmatpush1.msra.mxu0 %v399
          %452 = vmatprep.subr.mxu0 0.0
          %453 = vmatpush1.msra.mxu0 %v400
          %454 = vmatprep.subr.mxu0 0.0
          %455 = vmatpush1.msra.mxu0 %v401
          %456 = vmatprep.subr.mxu0 0.0
          %457 = vmatpush1.msra.mxu0 %v402
          %458 = vmatprep.subr.mxu0 0.0
          %459 = vmatpush1.msra.mxu0 %v403
          %460 = vmatprep.subr.mxu0 0.0
          %461 = vmatpush1.msra.mxu0 %v404
          %462 = vmatprep.subr.mxu0 0.0
          %463 = vmatpush1.msra.mxu0 %v405
          %464 = vmatprep.subr.mxu0 0.0
          %465 = vmatpush1.msra.mxu0 %v406
          %466 = vmatprep.subr.mxu0 0.0
          %467 = vmatpush1.msra.mxu0 %v407
          %468 = vmatprep.subr.mxu0 0.0
          %469 = vmatpush1.msra.mxu0 %v408
          %470 = vmatprep.subr.mxu0 0.0
          %471 = vmatpush1.msra.mxu0 %v409
          %472 = vmatprep.subr.mxu0 0.0
          %473 = vmatpush1.msra.mxu0 %v410
          %474 = vmatprep.subr.mxu0 0.0
          %475 = vmatpush1.msra.mxu0 %v411
          %476 = vmatprep.subr.mxu0 0.0
          %477 = vmatpush1.msra.mxu0 %v412
          %478 = vmatprep.subr.mxu0 0.0
          %479 = vmatpush1.msra.mxu0 %v413
          %480 = vmatprep.subr.mxu0 0.0
          %481 = vmatpush1.msra.mxu0 %v414
          %482 = vmatprep.subr.mxu0 0.0
          %483 = vmatpush1.msra.mxu0 %v415
          %484 = vmatprep.subr.mxu0 0.0
          %485 = vmatpush1.msra.mxu0 %v416
          %486 = vmatprep.subr.mxu0 0.0
          %487 = vmatpush1.msra.mxu0 %v417
          %488 = vmatprep.subr.mxu0 0.0
          %489 = vmatpush1.msra.mxu0 %v418
          %490 = vmatprep.subr.mxu0 0.0
          %491 = vmatpush1.msra.mxu0 %v419
          %492 = vmatprep.subr.mxu0 0.0
          %493 = vmatpush1.msra.mxu0 %v420
          %494 = vmatprep.subr.mxu0 0.0
          %495 = vmatpush1.msra.mxu0 %v421
          %496 = vmatprep.subr.mxu0 0.0
          %497 = vmatpush1.msra.mxu0 %v422
          %498 = vmatprep.subr.mxu0 0.0
          %499 = vmatpush1.msra.mxu0 %v423
          %500 = vmatprep.mubr.f32.mxu0 %v433
          %501 = vmatmul.mubr.f32.gmra.mrb[0].mxu0 %v429
          %v502 = vpop.f32.mrb[0].mxu0
          %v503 = vadd.f32 %v424, %v502
          %v504 = vpop.f32.mrb[0].mxu0
          %505 = vdwg.mxu0
          %v506 = vmul.f32 %v503, %v503
          %vm507 = vcmask 1040384
          %v508 = vsel %vm507, %v506, 0.0
          %509 = vadd.xlane.f32.xlu0 %v508
          %v510 = vpop.xlane.xlu0 %509
          %v511 = vmax.f32 %v510, 1e-24
          %v512 = vrsqrt.pop %v511
          %v513 = vmul.f32 %v503, %v512
          %514 = vst [vmem:[%s239] sm:$0x1] %v513
        $region48: #{video_modality_forward.1} parent=39 // pred_fallthru
          _
        %s515 = sand.u32 %s151, 1
        %s516 = scalar_lea.sflag [#allocation4], %s515
        %s517 = sand.u32 %s151, 1
        %s518 = scalar_lea.vmem [#allocation3], %s517
        // Predicated region
        $region49: #{video_modality_forward.1} parent=39 // pred_check
          %p519 = pneg %p161
        $region50: #{video_modality_forward.1} parent=39 // pred_check_branch
          %521 = sbr.rel (%p519) target = $region52
        $region51: #{video_modality_forward.1} parent=39 // pred_region
          %s523 = ssub.s32 16, 16
          %524 = vsyncadd %s516, %s523
          %s525 = smul.addr %s23, 16
          %s526 = scalar_lea.hbm %s5, %s525
          %s528 = sshll.u32 %s518, 4
          %s529 = int_to_ptr.vmem [resolvable:$true] %s528
          %531 = dma.vmem_to_hbm [thread:$0]  %s529, 16, %s526, %s516
        $region52: #{video_modality_forward.1} parent=39 // pred_fallthru
          _
      $region40: #{video_modality_forward.1} parent=5 // pred_fallthru
        _
      %p532 = scmp.le.s32.totalorder 2, %s14
      // Predicated region
      $region53: #{video_modality_forward.1} parent=5 // pred_check
        %p533 = pneg %p532
      $region54: #{video_modality_forward.1} parent=5 // pred_check_branch
        %535 = sbr.rel (%p533) target = $region56
      $region55: #{video_modality_forward.1} parent=5 // pred_region
        %s536 = ssub.s32 %s14, 2
        // Predicated region
        $region57: #{video_modality_forward.1} parent=55 // pred_check
          %p537 = pneg %p167
        $region58: #{video_modality_forward.1} parent=55 // pred_check_branch
          %539 = sbr.rel (%p537) target = $region60
        $region59: #{video_modality_forward.1} parent=55 // pred_region
          %s540 = sand.u32 %s152, 1
          %s541 = scalar_lea.sflag [#allocation4], %s540
          %s542 = sand.u32 %s152, 1
          %s543 = scalar_lea.vmem [#allocation3], %s542
          %544 = dma.done %s541, 16
        $region60: #{video_modality_forward.1} parent=55 // pred_fallthru
          _
      $region56: #{video_modality_forward.1} parent=5 // pred_fallthru
        _
    $region6: #{video_modality_forward.1} parent=1 // loop_footer
      %s18 = sadd.s32 1, %s14
    $region7: #{video_modality_forward.1} parent=1 // loop_footer_branch
      %13 = sbr.rel target = $region3
    $region8: #{video_modality_forward.1} parent=1 // loop_exit
      _
    %545 = vsyncpa [#allocation4], 1
    %s546 = scalar_lea.sflag [#allocation4], 1
    %547 = vsyncpa %s546, 1

</llo_original>
